<compile_context>
chip_gen: v5e
topology: v5e:2x2
jax: 0.10.0
libtpu: 0.0.40
codegen_flags: <defaults>
</compile_context>

<pallas_src>
import jax
import jax.numpy as jnp
from jax import lax
from jax.experimental import pallas as pl
from jax.experimental.pallas import tpu as pltpu

_HIGHEST = jax.lax.Precision.HIGHEST


def _row_softmax(a):
    """Numerically stable, exact softmax over the last (lane) axis of a 2-D block."""
    amax = jnp.max(a, axis=-1, keepdims=True)
    e = jnp.exp(a - amax)
    return e / jnp.sum(e, axis=-1, keepdims=True)


def _ctc_aligner_kernel(logits_ref, kw_onehot_ref, fe_ref,
                        w1a_ref, w1b_ref, b1_ref, w2_ref, b2_ref,
                        out_ref):
    # logits_ref: (T*B, C)  row t*B+b      kw_onehot_ref: (B, C)
    # fe_ref:     (T*B, H)  row t*B+b      out_ref:       (T*B, S)
    TB, C = logits_ref.shape
    B = kw_onehot_ref.shape[0]
    S = out_ref.shape[-1]
    T = TB // B

    # ---- 1) log_softmax over classes on the sublane-dense (T*B, C) slab ----
    logits = logits_ref[...]
    lmax = jnp.max(logits, axis=-1, keepdims=True)
    lse = jnp.log(jnp.sum(jnp.exp(logits - lmax), axis=-1, keepdims=True)) + lmax
    lp = logits - lse                                              # (T*B, C)

    # ---- 2) alignment-MLP transition scores for all t = 1..T-1 at once -----
    # cat([fe[t], fe[t-1]]) @ W1 == fe[t] @ W1[:H] + fe[t-1] @ W1[H:]
    fe = fe_ref[...]                                               # (T*B, H)
    h = (jnp.dot(fe[B:], w1a_ref[...],
                 precision=_HIGHEST, preferred_element_type=jnp.float32)
         + jnp.dot(fe[:TB - B], w1b_ref[...],
                   precision=_HIGHEST, preferred_element_type=jnp.float32)
         + b1_ref[...])
    h = jnp.maximum(h, 0.0)                                        # ReLU
    trans = (jnp.dot(h, w2_ref[...],
                     precision=_HIGHEST, preferred_element_type=jnp.float32)
             + b2_ref[...])                                        # ((T-1)*B, S)

    # E[(t-1)*B + b, :] = log_probs[t, b, :] + trans[t, b, :]   (t = 1 .. T-1)
    e_score = lp[B:] + trans                                       # ((T-1)*B, S)

    # ---- 3) initial forward row fwd0[b] = [lp(t=0, b, kw_b), 0, ..., 0] ----
    lp0 = jnp.sum(lp[:B] * kw_onehot_ref[...], axis=-1, keepdims=True)   # (B, 1)
    state_iota = lax.broadcasted_iota(jnp.int32, (B, S), 1)
    fwd0 = jnp.where(state_iota == 0, lp0, 0.0)                    # (B, S)

    # ---- 4+5) collapsed forward/backward recursion + softmax over states ---
    # a[0] = fwd0 + E[1];  a[t] = E[t] + E[t+1] (1<=t<=T-2);  a[T-1] = E[T-1]
    # (per-(b,t) scalar LSE prefix/suffix terms cancel inside the softmax)
    out_ref[pl.ds(0, B), :] = _row_softmax(fwd0 + e_score[:B])
    if T > 2:
        out_ref[pl.ds(B, (T - 2) * B), :] = _row_softmax(
            e_score[:(T - 2) * B] + e_score[B:])
    out_ref[pl.ds((T - 1) * B, B), :] = _row_softmax(e_score[(T - 2) * B:])


def ctc_aligner_forward(ctc_logits, frame_embeddings, keyword_tokens, params):
    """ctc_logits (B,T,C), frame_embeddings (B,T,H), keyword_tokens (B,U) -> (B,T,S)."""
    w1, b1, w2, b2 = params                    # w1 (2H,H), b1 (H,), w2 (H,S), b2 (S,)
    B, T, C = ctc_logits.shape
    H = frame_embeddings.shape[-1]
    S = w2.shape[-1]
    assert C == S, "module broadcasting requires Num_Classes == Num_States"
    assert T >= 2, "need at least two time steps"

    # glue: time-major, sublane-dense 2-D slabs (row index = t*B + b)
    logits2d = jnp.transpose(ctc_logits, (1, 0, 2)).reshape(T * B, C).astype(jnp.float32)
    fe2d = jnp.transpose(frame_embeddings, (1, 0, 2)).reshape(T * B, H).astype(jnp.float32)
    kw0 = keyword_tokens[:, 0].astype(jnp.int32)
    kw_onehot = (kw0[:, None] ==
                 jnp.arange(C, dtype=jnp.int32)[None, :]).astype(jnp.float32)  # (B, C)

    vmem = pl.BlockSpec(memory_space=pltpu.MemorySpace.VMEM)
    out2d = pl.pallas_call(
        _ctc_aligner_kernel,
        out_shape=jax.ShapeDtypeStruct((T * B, S), jnp.float32),
        in_specs=[vmem] * 8,
        out_specs=vmem,
        compiler_params=pltpu.CompilerParams(vmem_limit_bytes=32 * 1024 * 1024),
    )(logits2d, kw_onehot, fe2d,
      w1[:H].astype(jnp.float32), w1[H:].astype(jnp.float32),
      b1.reshape(1, H).astype(jnp.float32),
      w2.astype(jnp.float32), b2.reshape(1, S).astype(jnp.float32))

    return jnp.transpose(out2d.reshape(T, B, S), (1, 0, 2))


def init_params(key, num_states, hidden_dim):
    """Deterministic synthetic params for nn.Linear(2H,H) -> ReLU -> nn.Linear(H,S)."""
    k1, k2, k3, k4 = jax.random.split(key, 4)
    w1 = jax.random.normal(k1, (2 * hidden_dim, hidden_dim), jnp.float32) * 0.1
    b1 = jax.random.normal(k2, (hidden_dim,), jnp.float32) * 0.1
    w2 = jax.random.normal(k3, (hidden_dim, num_states), jnp.float32) * 0.1
    b2 = jax.random.normal(k4, (num_states,), jnp.float32) * 0.1
    return (w1, b1, w2, b2)


def _reference(ctc_logits, fe, kw, params):
    """Pure-JAX transcription of the PyTorch forward (per-batch keyword gather).

    Matmuls use precision=HIGHEST so the reference is true f32 (matching the kernel)
    instead of XLA's default 1-pass-bf16 TPU matmul.
    """
    w1, b1, w2, b2 = params
    B, T, _ = ctc_logits.shape
    S = w2.shape[-1]
    lp = jax.nn.log_softmax(ctc_logits, axis=-1)

    def mlp(x):
        h = jnp.maximum(jnp.dot(x, w1, precision=_HIGHEST) + b1, 0.0)
        return jnp.dot(h, w2, precision=_HIGHEST) + b2

    lp0 = lp[jnp.arange(B), 0, kw[:, 0]]
    fwd = [jnp.zeros((B, S), jnp.float32).at[:, 0].set(lp0)]
    for t in range(1, T):
        trans = mlp(jnp.concatenate([fe[:, t], fe[:, t - 1]], axis=-1))
        m = (lp[:, t] + trans)[:, :, None] + fwd[t - 1][:, None, :]
        fwd.append(jax.scipy.special.logsumexp(m, axis=-1))
    bwd = [None] * T
    bwd[T - 1] = jnp.zeros((B, S), jnp.float32)
    for t in range(T - 2, -1, -1):
        trans = mlp(jnp.concatenate([fe[:, t + 1], fe[:, t]], axis=-1))
        m = (lp[:, t + 1] + trans)[:, :, None] + bwd[t + 1][:, None, :]
        bwd[t] = jax.scipy.special.logsumexp(m, axis=-1)
    a = jnp.stack(fwd, axis=1) + jnp.stack(bwd, axis=1)
    return jax.nn.softmax(a, axis=-1)


if __name__ == "__main__":
    key = jax.random.PRNGKey(0)
    B, T, H = 2, 8, 32           # batch, time steps, hidden_dim
    U = 8                        # keyword length
    S = 2 * U - 1                # num_states
    C = S                        # num_classes (must equal num_states, see header note)

    k1, k2, k3, kp = jax.random.split(key, 4)
    ctc_logits = jax.random.normal(k1, (B, T, C), jnp.float32)
    frame_embeddings = jax.random.normal(k2, (B, T, H), jnp.float32)
    keyword_tokens = jax.random.randint(k3, (B, U), 0, C, jnp.int32)
    params = init_params(kp, S, H)

    out = ctc_aligner_forward(ctc_logits, frame_embeddings, keyword_tokens, params)
    out = jax.block_until_ready(out)

    ref = _reference(ctc_logits, frame_embeddings, keyword_tokens, params)
    assert out.shape == (B, T, S)
    err = float(jnp.max(jnp.abs(out - ref)))
    # expected ~1e-6; 1e-3 margin covers any residual matmul/exp implementation deltas
    assert err < 1e-3, f"kernel/reference mismatch (max abs err = {err})"
    print("KERNEL_OK")
</pallas_src>

<mosaic_0001>
module attributes {stable_mosaic.version = 11 : i64} {
  func.func @_ctc_aligner_kernel(%arg0: memref<16x15xf32, #tpu.memory_space<vmem>>, %arg1: memref<2x15xf32, #tpu.memory_space<vmem>>, %arg2: memref<16x32xf32, #tpu.memory_space<vmem>>, %arg3: memref<32x32xf32, #tpu.memory_space<vmem>>, %arg4: memref<32x32xf32, #tpu.memory_space<vmem>>, %arg5: memref<1x32xf32, #tpu.memory_space<vmem>>, %arg6: memref<32x15xf32, #tpu.memory_space<vmem>>, %arg7: memref<1x15xf32, #tpu.memory_space<vmem>>, %arg8: memref<16x15xf32, #tpu.memory_space<vmem>>) attributes {dimension_semantics = [], scalar_prefetch = 0 : i64, scratch_operands = 0 : i64, tpu.core_type = #tpu.core_type<tc>} {
    %c0 = arith.constant 0 : index
    %c0_0 = arith.constant 0 : index
    %0 = vector.load %arg0[%c0, %c0_0] : memref<16x15xf32, #tpu.memory_space<vmem>>, vector<16x15xf32>
    %cst = arith.constant dense<0xFF800000> : vector<16xf32>
    %1 = vector.multi_reduction <maximumf>, %0, %cst [1] : vector<16x15xf32> to vector<16xf32>
    %2 = vector.shape_cast %1 : vector<16xf32> to vector<16x1xf32>
    %3 = vector.broadcast %2 : vector<16x1xf32> to vector<16x15xf32>
    %4 = arith.subf %0, %3 : vector<16x15xf32>
    %5 = math.exp %4 : vector<16x15xf32>
    %cst_1 = arith.constant dense<0.000000e+00> : vector<16xf32>
    %6 = vector.multi_reduction <add>, %5, %cst_1 [1] : vector<16x15xf32> to vector<16xf32>
    %7 = vector.shape_cast %6 : vector<16xf32> to vector<16x1xf32>
    %8 = math.log %7 : vector<16x1xf32>
    %9 = arith.addf %8, %2 : vector<16x1xf32>
    %10 = vector.broadcast %9 : vector<16x1xf32> to vector<16x15xf32>
    %11 = arith.subf %0, %10 : vector<16x15xf32>
    %c0_2 = arith.constant 0 : index
    %c0_3 = arith.constant 0 : index
    %12 = vector.load %arg2[%c0_2, %c0_3] : memref<16x32xf32, #tpu.memory_space<vmem>>, vector<16x32xf32>
    %13 = vector.extract_strided_slice %12 {offsets = [2, 0], sizes = [14, 32], strides = [1, 1]} : vector<16x32xf32> to vector<14x32xf32>
    %c0_4 = arith.constant 0 : index
    %c0_5 = arith.constant 0 : index
    %14 = vector.load %arg3[%c0_4, %c0_5] : memref<32x32xf32, #tpu.memory_space<vmem>>, vector<32x32xf32>
    %cst_6 = arith.constant dense<0.000000e+00> : vector<14x32xf32>
    %15 = tpu.matmul %13, %14, %cst_6 {dimension_numbers = #tpu.dot_dimension_numbers<[1], [0], [0], [1], [0, 0, 1, 1], [], []>, precision = #tpu.contract_precision<fp32>} : vector<14x32xf32>, vector<32x32xf32>, vector<14x32xf32> -> vector<14x32xf32>
    %16 = vector.extract_strided_slice %12 {offsets = [0, 0], sizes = [14, 32], strides = [1, 1]} : vector<16x32xf32> to vector<14x32xf32>
    %c0_7 = arith.constant 0 : index
    %c0_8 = arith.constant 0 : index
    %17 = vector.load %arg4[%c0_7, %c0_8] : memref<32x32xf32, #tpu.memory_space<vmem>>, vector<32x32xf32>
    %cst_9 = arith.constant dense<0.000000e+00> : vector<14x32xf32>
    %18 = tpu.matmul %16, %17, %cst_9 {dimension_numbers = #tpu.dot_dimension_numbers<[1], [0], [0], [1], [0, 0, 1, 1], [], []>, precision = #tpu.contract_precision<fp32>} : vector<14x32xf32>, vector<32x32xf32>, vector<14x32xf32> -> vector<14x32xf32>
    %19 = arith.addf %15, %18 : vector<14x32xf32>
    %c0_10 = arith.constant 0 : index
    %c0_11 = arith.constant 0 : index
    %20 = vector.load %arg5[%c0_10, %c0_11] : memref<1x32xf32, #tpu.memory_space<vmem>>, vector<1x32xf32>
    %21 = vector.broadcast %20 : vector<1x32xf32> to vector<14x32xf32>
    %22 = arith.addf %19, %21 : vector<14x32xf32>
    %cst_12 = arith.constant 0.000000e+00 : f32
    %23 = vector.broadcast %cst_12 : f32 to vector<14x32xf32>
    %24 = arith.maximumf %22, %23 : vector<14x32xf32>
    %c0_13 = arith.constant 0 : index
    %c0_14 = arith.constant 0 : index
    %25 = vector.load %arg6[%c0_13, %c0_14] : memref<32x15xf32, #tpu.memory_space<vmem>>, vector<32x15xf32>
    %cst_15 = arith.constant dense<0.000000e+00> : vector<14x15xf32>
    %26 = tpu.matmul %24, %25, %cst_15 {dimension_numbers = #tpu.dot_dimension_numbers<[1], [0], [0], [1], [0, 0, 1, 1], [], []>, precision = #tpu.contract_precision<fp32>} : vector<14x32xf32>, vector<32x15xf32>, vector<14x15xf32> -> vector<14x15xf32>
    %c0_16 = arith.constant 0 : index
    %c0_17 = arith.constant 0 : index
    %27 = vector.load %arg7[%c0_16, %c0_17] : memref<1x15xf32, #tpu.memory_space<vmem>>, vector<1x15xf32>
    %28 = vector.broadcast %27 : vector<1x15xf32> to vector<14x15xf32>
    %29 = arith.addf %26, %28 : vector<14x15xf32>
    %30 = vector.extract_strided_slice %11 {offsets = [2, 0], sizes = [14, 15], strides = [1, 1]} : vector<16x15xf32> to vector<14x15xf32>
    %31 = arith.addf %30, %29 : vector<14x15xf32>
    %32 = vector.extract_strided_slice %11 {offsets = [0, 0], sizes = [2, 15], strides = [1, 1]} : vector<16x15xf32> to vector<2x15xf32>
    %c0_18 = arith.constant 0 : index
    %c0_19 = arith.constant 0 : index
    %33 = vector.load %arg1[%c0_18, %c0_19] : memref<2x15xf32, #tpu.memory_space<vmem>>, vector<2x15xf32>
    %34 = arith.mulf %32, %33 : vector<2x15xf32>
    %cst_20 = arith.constant dense<0.000000e+00> : vector<2xf32>
    %35 = vector.multi_reduction <add>, %34, %cst_20 [1] : vector<2x15xf32> to vector<2xf32>
    %36 = vector.shape_cast %35 : vector<2xf32> to vector<2x1xf32>
    %37 = tpu.iota {dimensions = array<i32: 1>} : vector<2x15xi32>
    %c0_i32 = arith.constant 0 : i32
    %38 = vector.broadcast %c0_i32 : i32 to vector<2x15xi32>
    %39 = arith.cmpi eq, %37, %38 : vector<2x15xi32>
    %cst_21 = arith.constant 0.000000e+00 : f32
    %40 = vector.shape_cast %36 : vector<2x1xf32> to vector<2x1xf32>
    %41 = vector.broadcast %40 : vector<2x1xf32> to vector<2x15xf32>
    %42 = vector.broadcast %cst_21 : f32 to vector<2x15xf32>
    %43 = arith.select %39, %41, %42 : vector<2x15xi1>, vector<2x15xf32>
    %44 = vector.extract_strided_slice %31 {offsets = [0, 0], sizes = [2, 15], strides = [1, 1]} : vector<14x15xf32> to vector<2x15xf32>
    %45 = arith.addf %43, %44 : vector<2x15xf32>
    %cst_22 = arith.constant dense<0xFF800000> : vector<2xf32>
    %46 = vector.multi_reduction <maximumf>, %45, %cst_22 [1] : vector<2x15xf32> to vector<2xf32>
    %47 = vector.shape_cast %46 : vector<2xf32> to vector<2x1xf32>
    %48 = vector.broadcast %47 : vector<2x1xf32> to vector<2x15xf32>
    %49 = arith.subf %45, %48 : vector<2x15xf32>
    %50 = math.exp %49 : vector<2x15xf32>
    %cst_23 = arith.constant dense<0.000000e+00> : vector<2xf32>
    %51 = vector.multi_reduction <add>, %50, %cst_23 [1] : vector<2x15xf32> to vector<2xf32>
    %52 = vector.shape_cast %51 : vector<2xf32> to vector<2x1xf32>
    %53 = vector.broadcast %52 : vector<2x1xf32> to vector<2x15xf32>
    %54 = arith.divf %50, %53 : vector<2x15xf32>
    %c0_24 = arith.constant 0 : index
    %c0_25 = arith.constant 0 : index
    %55 = vector.load %arg8[%c0_24, %c0_25] : memref<16x15xf32, #tpu.memory_space<vmem>>, vector<2x15xf32>
    tpu.vector_store %arg8[%c0_24, %c0_25], %54 {strides = array<i32>} : memref<16x15xf32, #tpu.memory_space<vmem>>, vector<2x15xf32>,
    %56 = vector.extract_strided_slice %31 {offsets = [0, 0], sizes = [12, 15], strides = [1, 1]} : vector<14x15xf32> to vector<12x15xf32>
    %57 = vector.extract_strided_slice %31 {offsets = [2, 0], sizes = [12, 15], strides = [1, 1]} : vector<14x15xf32> to vector<12x15xf32>
    %58 = arith.addf %56, %57 : vector<12x15xf32>
    %cst_26 = arith.constant dense<0xFF800000> : vector<12xf32>
    %59 = vector.multi_reduction <maximumf>, %58, %cst_26 [1] : vector<12x15xf32> to vector<12xf32>
    %60 = vector.shape_cast %59 : vector<12xf32> to vector<12x1xf32>
    %61 = vector.broadcast %60 : vector<12x1xf32> to vector<12x15xf32>
    %62 = arith.subf %58, %61 : vector<12x15xf32>
    %63 = math.exp %62 : vector<12x15xf32>
    %cst_27 = arith.constant dense<0.000000e+00> : vector<12xf32>
    %64 = vector.multi_reduction <add>, %63, %cst_27 [1] : vector<12x15xf32> to vector<12xf32>
    %65 = vector.shape_cast %64 : vector<12xf32> to vector<12x1xf32>
    %66 = vector.broadcast %65 : vector<12x1xf32> to vector<12x15xf32>
    %67 = arith.divf %63, %66 : vector<12x15xf32>
    %c2 = arith.constant 2 : index
    %c0_28 = arith.constant 0 : index
    %68 = vector.load %arg8[%c2, %c0_28] : memref<16x15xf32, #tpu.memory_space<vmem>>, vector<12x15xf32>
    tpu.vector_store %arg8[%c2, %c0_28], %67 {strides = array<i32>} : memref<16x15xf32, #tpu.memory_space<vmem>>, vector<12x15xf32>,
    %69 = vector.extract_strided_slice %31 {offsets = [12, 0], sizes = [2, 15], strides = [1, 1]} : vector<14x15xf32> to vector<2x15xf32>
    %cst_29 = arith.constant dense<0xFF800000> : vector<2xf32>
    %70 = vector.multi_reduction <maximumf>, %69, %cst_29 [1] : vector<2x15xf32> to vector<2xf32>
    %71 = vector.shape_cast %70 : vector<2xf32> to vector<2x1xf32>
    %72 = vector.broadcast %71 : vector<2x1xf32> to vector<2x15xf32>
    %73 = arith.subf %69, %72 : vector<2x15xf32>
    %74 = math.exp %73 : vector<2x15xf32>
    %cst_30 = arith.constant dense<0.000000e+00> : vector<2xf32>
    %75 = vector.multi_reduction <add>, %74, %cst_30 [1] : vector<2x15xf32> to vector<2xf32>
    %76 = vector.shape_cast %75 : vector<2xf32> to vector<2x1xf32>
    %77 = vector.broadcast %76 : vector<2x1xf32> to vector<2x15xf32>
    %78 = arith.divf %74, %77 : vector<2x15xf32>
    %c14 = arith.constant 14 : index
    %c0_31 = arith.constant 0 : index
    %79 = vector.load %arg8[%c14, %c0_31] : memref<16x15xf32, #tpu.memory_space<vmem>>, vector<2x15xf32>
    tpu.vector_store %arg8[%c14, %c0_31], %78 {strides = array<i32>} : memref<16x15xf32, #tpu.memory_space<vmem>>, vector<2x15xf32>,
    return
  }
}

</mosaic_0001>

<llo_original>
// kernel: tpu_custom_call.1
$region0: #{tpu_custom_call.1}
  #allocation0 [shape = 'u32[]', space=smem, size = 0x4, offset = 0x4, fixed_abs, tag = 'smem constant byte address 0x4 - core index']
  #allocation1 [shape = 'u32[72,128]{1,0:T(1,128)}', space=vmem, size = 0x9000, scoped, tag = 'internal scratch']
  %s0 = inlined_call_operand.vmem [shape: f32[16,15], index: 0, kind: input, shape index: {}]
  %s1 = inlined_call_operand.vmem [shape: f32[2,15], index: 1, kind: input, shape index: {}]
  %s2 = inlined_call_operand.hbm [shape: f32[16,32], index: 2, kind: input, shape index: {}]
  %s3 = inlined_call_operand.vmem [shape: f32[32,32], index: 3, kind: input, shape index: {}]
  %s4 = inlined_call_operand.hbm [shape: f32[32,32], index: 4, kind: input, shape index: {}]
  %s5 = inlined_call_operand.vmem [shape: f32[1,32], index: 5, kind: input, shape index: {}]
  %s6 = inlined_call_operand.vmem [shape: f32[32,15], index: 6, kind: input, shape index: {}]
  %s7 = inlined_call_operand.vmem [shape: f32[1,15], index: 7, kind: input, shape index: {}]
  %s8 = inlined_call_operand.hbm [shape: f32[16,15], index: 8, kind: output, shape index: {}]
  %s9 = sld [smem:[#allocation0]]
  $region50: #{tpu_custom_call.1} parent=0
    _
  %s11 = ssub.s32 1, %s9
  %s12 = scalar_select 0, %s11, %s9
  $region1: #{tpu_custom_call.1} parent=0
    #allocation2 [shape = 'u8[8192]{0}', space=vmem, size = 0x2000, scoped, tag = 'input window, operand 2, single buffered']
    #allocation3 [shape = 's32[1]{0}', space=sflag, size = 0x4, scoped, tag = 'scoped memory for tpu_custom_call.1']
    #allocation4 [shape = 's32[1]{0}', space=sflag, size = 0x4, scoped, tag = 'scoped memory for tpu_custom_call.1']
    #allocation5 [shape = 'u8[16384]{0}', space=vmem, size = 0x4000, scoped, tag = 'input window, operand 4, single buffered']
    #allocation6 [shape = 's32[1]{0}', space=sflag, size = 0x4, scoped, tag = 'scoped memory for tpu_custom_call.1']
    #allocation7 [shape = 'u8[8192]{0}', space=vmem, size = 0x2000, scoped, tag = 'output window, operand 0, single buffered']
    %13 = vsyncpa [#allocation3], 0
    %14 = vsyncpa [#allocation6], 0
    %15 = vsyncpa [#allocation4], 0
    // Predicated region
    $region2: #{tpu_custom_call.1} parent=1 // pred_check
      _
    $region3: #{tpu_custom_call.1} parent=1 // pred_check_branch
      %17 = sbr.rel (0) target = $region5
    $region4: #{tpu_custom_call.1} parent=1 // pred_region
      _
    $region5: #{tpu_custom_call.1} parent=1 // pred_fallthru
      _
    // Predicated region
    $region6: #{tpu_custom_call.1} parent=1 // pred_check
      _
    $region7: #{tpu_custom_call.1} parent=1 // pred_check_branch
      %19 = sbr.rel (0) target = $region9
    $region8: #{tpu_custom_call.1} parent=1 // pred_region
      _
    $region9: #{tpu_custom_call.1} parent=1 // pred_fallthru
      _
    // Predicated region
    $region10: #{tpu_custom_call.1} parent=1 // pred_check
      _
    $region11: #{tpu_custom_call.1} parent=1 // pred_check_branch
      %21 = sbr.rel (0) target = $region13
    $region12: #{tpu_custom_call.1} parent=1 // pred_region
      %23 = vsyncadd [#allocation3], 0
      %s24 = sshll.u32 %s2, 4
      %s25 = int_to_ptr.hbm [resolvable:$true] %s24
      %s26 = sshll.u32 [#allocation2], 4
      %s27 = int_to_ptr.vmem [resolvable:$true] %s26
      %32 = dma.hbm_to_vmem [thread:$0]  %s25, 256, %s27, [#allocation3], 128, 128, 8
    $region13: #{tpu_custom_call.1} parent=1 // pred_fallthru
      _
    // Predicated region
    $region14: #{tpu_custom_call.1} parent=1 // pred_check
      _
    $region15: #{tpu_custom_call.1} parent=1 // pred_check_branch
      %34 = sbr.rel (0) target = $region17
    $region16: #{tpu_custom_call.1} parent=1 // pred_region
      _
    $region17: #{tpu_custom_call.1} parent=1 // pred_fallthru
      _
    // Predicated region
    $region18: #{tpu_custom_call.1} parent=1 // pred_check
      _
    $region19: #{tpu_custom_call.1} parent=1 // pred_check_branch
      %36 = sbr.rel (0) target = $region21
    $region20: #{tpu_custom_call.1} parent=1 // pred_region
      %38 = vsyncadd [#allocation6], 0
      %s39 = sshll.u32 %s4, 4
      %s40 = int_to_ptr.hbm [resolvable:$true] %s39
      %s41 = sshll.u32 [#allocation5], 4
      %s42 = int_to_ptr.vmem [resolvable:$true] %s41
      %47 = dma.hbm_to_vmem [thread:$0]  %s40, 512, %s42, [#allocation6], 128, 128, 8
    $region21: #{tpu_custom_call.1} parent=1 // pred_fallthru
      _
    // Predicated region
    $region22: #{tpu_custom_call.1} parent=1 // pred_check
      _
    $region23: #{tpu_custom_call.1} parent=1 // pred_check_branch
      %49 = sbr.rel (0) target = $region25
    $region24: #{tpu_custom_call.1} parent=1 // pred_region
      _
    $region25: #{tpu_custom_call.1} parent=1 // pred_fallthru
      _
    // Predicated region
    $region26: #{tpu_custom_call.1} parent=1 // pred_check
      _
    $region27: #{tpu_custom_call.1} parent=1 // pred_check_branch
      %51 = sbr.rel (0) target = $region29
    $region28: #{tpu_custom_call.1} parent=1 // pred_region
      _
    $region29: #{tpu_custom_call.1} parent=1 // pred_fallthru
      _
    // Predicated region
    $region30: #{tpu_custom_call.1} parent=1 // pred_check
      _
    $region31: #{tpu_custom_call.1} parent=1 // pred_check_branch
      %53 = sbr.rel (0) target = $region33
    $region32: #{tpu_custom_call.1} parent=1 // pred_region
      _
    $region33: #{tpu_custom_call.1} parent=1 // pred_fallthru
      _
    // Predicated region
    $region34: #{tpu_custom_call.1} parent=1 // pred_check
      _
    $region35: #{tpu_custom_call.1} parent=1 // pred_check_branch
      %55 = sbr.rel (0) target = $region37
    $region36: #{tpu_custom_call.1} parent=1 // pred_region
      %57 = dma.done [#allocation3], 256
    $region37: #{tpu_custom_call.1} parent=1 // pred_fallthru
      _
    // Predicated region
    $region38: #{tpu_custom_call.1} parent=1 // pred_check
      _
    $region39: #{tpu_custom_call.1} parent=1 // pred_check_branch
      %59 = sbr.rel (0) target = $region41
    $region40: #{tpu_custom_call.1} parent=1 // pred_region
      %61 = dma.done [#allocation6], 512
    $region41: #{tpu_custom_call.1} parent=1 // pred_fallthru
      _
    %v62 = vld [vmem:[%s0] sm:$0xff]
    %v63 = vld [vmem:[%s0 + $0x8] sm:$0xff]
    %vm64 = vcmask 121856
    %v65 = vsel %vm64, %v62, -inf
    %66 = vmax.xlane.f32.xlu0 %v65
    %v67 = vpop.xlane.xlu0 %66
    %v68 = vsel %vm64, %v63, -inf
    %69 = vmax.xlane.f32.xlu0 %v68
    %v70 = vpop.xlane.xlu0 %69
    %v71 = vsub.f32 %v62, %v67
    %v72 = vsub.f32 %v63, %v70
    %v73 = vmul.f32 %v71, 1.442695
    %v74 = vpow.pop %v73
    %v75 = vmul.f32 %v72, 1.442695
    %v76 = vpow.pop %v75
    %v77 = vsel %vm64, %v74, 0.0
    %78 = vadd.xlane.f32.xlu0 %v77
    %v79 = vpop.xlane.xlu0 %78
    %v80 = vsel %vm64, %v76, 0.0
    %81 = vadd.xlane.f32.xlu0 %v80
    %v82 = vpop.xlane.xlu0 %81
    %v83 = vlog2.pop %v79
    %v84 = vmul.f32 %v83, 0.6931472
    %v85 = vlog2.pop %v82
    %v86 = vmul.f32 %v85, 0.6931472
    %v87 = vadd.f32 %v84, %v67
    %v88 = vadd.f32 %v86, %v70
    %v89 = vsub.f32 %v62, %v87
    %v90 = vsub.f32 %v63, %v88
    %v91 = vld [vmem:[#allocation2] sm:$0xff]
    %v92 = vld [vmem:[#allocation2 + $0x8] sm:$0xff]
    %v93 = vld [vmem:[%s3] sm:$0xff]
    %v94 = vld [vmem:[%s3 + $0x8] sm:$0xff]
    %v95 = vld [vmem:[%s3 + $0x10] sm:$0xff]
    %v96 = vld [vmem:[%s3 + $0x18] sm:$0xff]
    %v97 = vld [vmem:[#allocation5] sm:$0xff]
    %v98 = vld [vmem:[#allocation5 + $0x8] sm:$0xff]
    %v99 = vld [vmem:[#allocation5 + $0x10] sm:$0xff]
    %v100 = vld [vmem:[#allocation5 + $0x18] sm:$0xff]
    %vm101 = vcmask 261120
    %v103 = vsel %vm101, %v91, 0
    %v106 = vsel %vm101, %v92, 0
    %108 = vmatpush.msra.mxu0 0.0
    %109 = vmatpush.msra.mxu0 0.0
    %110 = vmatpush.msra.mxu0 0.0
    %111 = vmatpush.msra.mxu0 0.0
    %112 = vmatpush.msra.mxu0 0.0
    %113 = vmatpush.msra.mxu0 0.0
    %114 = vmatpush.msra.mxu0 0.0
    %115 = vmatpush.msra.mxu0 0.0
    %116 = vmatpush.msra.mxu0 0.0
    %117 = vmatpush.msra.mxu0 0.0
    %118 = vmatpush.msra.mxu0 0.0
    %119 = vmatpush.msra.mxu0 0.0
    %v120 = vand.u32 %v100, 4294901760
    %121 = vmatpush.msra.mxu0 %v120
    %v122 = vand.u32 %v99, 4294901760
    %123 = vmatpush.msra.mxu0 %v122
    %v124 = vand.u32 %v98, 4294901760
    %125 = vmatpush.msra.mxu0 %v124
    %v126 = vand.u32 %v97, 4294901760
    %127 = vmatpush.msra.mxu0 %v126
    %v128 = vand.u32 %v103, 4294901760
    %v129 = vsub.f32 %v103, %v128
    %v130 = vand.u32 %v129, 4294901760
    %v131 = vsub.f32 %v129, %v130
    %v132 = vand.u32 %v131, 4294901760
    %133 = vmatmul.f32.gmra.mxu0 %v132
    %v134 = vpop.f32.mrf.mxu0
    %v135 = vadd.f32 0.0, %v134
    %v136 = vand.u32 %v106, 4294901760
    %v137 = vsub.f32 %v106, %v136
    %v138 = vand.u32 %v137, 4294901760
    %v139 = vsub.f32 %v137, %v138
    %v140 = vand.u32 %v139, 4294901760
    %141 = vmatmul.f32.gmra.mxu0 %v140
    %v142 = vpop.f32.mrf.mxu0
    %v143 = vadd.f32 0.0, %v142
    %144 = vdwg.mxu0
    %145 = vmatpush.msra.mxu0 0.0
    %146 = vmatpush.msra.mxu0 0.0
    %147 = vmatpush.msra.mxu0 0.0
    %148 = vmatpush.msra.mxu0 0.0
    %149 = vmatpush.msra.mxu0 0.0
    %150 = vmatpush.msra.mxu0 0.0
    %151 = vmatpush.msra.mxu0 0.0
    %152 = vmatpush.msra.mxu0 0.0
    %153 = vmatpush.msra.mxu0 0.0
    %154 = vmatpush.msra.mxu0 0.0
    %155 = vmatpush.msra.mxu0 0.0
    %156 = vmatpush.msra.mxu0 0.0
    %v157 = vand.u32 %v100, 4294901760
    %v158 = vsub.f32 %v100, %v157
    %v159 = vand.u32 %v158, 4294901760
    %v160 = vsub.f32 %v158, %v159
    %v161 = vand.u32 %v160, 4294901760
    %162 = vmatpush.msra.mxu0 %v161
    %v163 = vand.u32 %v99, 4294901760
    %v164 = vsub.f32 %v99, %v163
    %v165 = vand.u32 %v164, 4294901760
    %v166 = vsub.f32 %v164, %v165
    %v167 = vand.u32 %v166, 4294901760
    %168 = vmatpush.msra.mxu0 %v167
    %v169 = vand.u32 %v98, 4294901760
    %v170 = vsub.f32 %v98, %v169
    %v171 = vand.u32 %v170, 4294901760
    %v172 = vsub.f32 %v170, %v171
    %v173 = vand.u32 %v172, 4294901760
    %174 = vmatpush.msra.mxu0 %v173
    %v175 = vand.u32 %v97, 4294901760
    %v176 = vsub.f32 %v97, %v175
    %v177 = vand.u32 %v176, 4294901760
    %v178 = vsub.f32 %v176, %v177
    %v179 = vand.u32 %v178, 4294901760
    %180 = vmatpush.msra.mxu0 %v179
    %v181 = vand.u32 %v103, 4294901760
    %182 = vmatmul.f32.gmra.mxu0 %v181
    %v183 = vpop.f32.mrf.mxu0
    %v184 = vadd.f32 %v135, %v183
    %v185 = vand.u32 %v106, 4294901760
    %186 = vmatmul.f32.gmra.mxu0 %v185
    %v187 = vpop.f32.mrf.mxu0
    %v188 = vadd.f32 %v143, %v187
    %189 = vdwg.mxu0
    %190 = vmatpush.msra.mxu0 0.0
    %191 = vmatpush.msra.mxu0 0.0
    %192 = vmatpush.msra.mxu0 0.0
    %193 = vmatpush.msra.mxu0 0.0
    %194 = vmatpush.msra.mxu0 0.0
    %195 = vmatpush.msra.mxu0 0.0
    %196 = vmatpush.msra.mxu0 0.0
    %197 = vmatpush.msra.mxu0 0.0
    %198 = vmatpush.msra.mxu0 0.0
    %199 = vmatpush.msra.mxu0 0.0
    %200 = vmatpush.msra.mxu0 0.0
    %201 = vmatpush.msra.mxu0 0.0
    %v202 = vand.u32 %v100, 4294901760
    %v203 = vsub.f32 %v100, %v202
    %204 = vmatpush.msra.mxu0 %v203
    %v205 = vand.u32 %v99, 4294901760
    %v206 = vsub.f32 %v99, %v205
    %207 = vmatpush.msra.mxu0 %v206
    %v208 = vand.u32 %v98, 4294901760
    %v209 = vsub.f32 %v98, %v208
    %210 = vmatpush.msra.mxu0 %v209
    %v211 = vand.u32 %v97, 4294901760
    %v212 = vsub.f32 %v97, %v211
    %213 = vmatpush.msra.mxu0 %v212
    %v214 = vand.u32 %v103, 4294901760
    %v215 = vsub.f32 %v103, %v214
    %216 = vmatmul.f32.gmra.mxu0 %v215
    %v217 = vpop.f32.mrf.mxu0
    %v218 = vadd.f32 %v184, %v217
    %v219 = vand.u32 %v106, 4294901760
    %v220 = vsub.f32 %v106, %v219
    %221 = vmatmul.f32.gmra.mxu0 %v220
    %v222 = vpop.f32.mrf.mxu0
    %v223 = vadd.f32 %v188, %v222
    %224 = vdwg.mxu0
    %225 = vmatpush.msra.mxu0 0.0
    %226 = vmatpush.msra.mxu0 0.0
    %227 = vmatpush.msra.mxu0 0.0
    %228 = vmatpush.msra.mxu0 0.0
    %229 = vmatpush.msra.mxu0 0.0
    %230 = vmatpush.msra.mxu0 0.0
    %231 = vmatpush.msra.mxu0 0.0
    %232 = vmatpush.msra.mxu0 0.0
    %233 = vmatpush.msra.mxu0 0.0
    %234 = vmatpush.msra.mxu0 0.0
    %235 = vmatpush.msra.mxu0 0.0
    %236 = vmatpush.msra.mxu0 0.0
    %v237 = vand.u32 %v100, 4294901760
    %238 = vmatpush.msra.mxu0 %v237
    %v239 = vand.u32 %v99, 4294901760
    %240 = vmatpush.msra.mxu0 %v239
    %v241 = vand.u32 %v98, 4294901760
    %242 = vmatpush.msra.mxu0 %v241
    %v243 = vand.u32 %v97, 4294901760
    %244 = vmatpush.msra.mxu0 %v243
    %v245 = vand.u32 %v103, 4294901760
    %v246 = vsub.f32 %v103, %v245
    %v247 = vand.u32 %v246, 4294901760
    %248 = vmatmul.f32.gmra.mxu0 %v247
    %v249 = vpop.f32.mrf.mxu0
    %v250 = vadd.f32 %v218, %v249
    %v251 = vand.u32 %v106, 4294901760
    %v252 = vsub.f32 %v106, %v251
    %v253 = vand.u32 %v252, 4294901760
    %254 = vmatmul.f32.gmra.mxu0 %v253
    %v255 = vpop.f32.mrf.mxu0
    %v256 = vadd.f32 %v223, %v255
    %257 = vdwg.mxu0
    %258 = vmatpush.msra.mxu0 0.0
    %259 = vmatpush.msra.mxu0 0.0
    %260 = vmatpush.msra.mxu0 0.0
    %261 = vmatpush.msra.mxu0 0.0
    %262 = vmatpush.msra.mxu0 0.0
    %263 = vmatpush.msra.mxu0 0.0
    %264 = vmatpush.msra.mxu0 0.0
    %265 = vmatpush.msra.mxu0 0.0
    %266 = vmatpush.msra.mxu0 0.0
    %267 = vmatpush.msra.mxu0 0.0
    %268 = vmatpush.msra.mxu0 0.0
    %269 = vmatpush.msra.mxu0 0.0
    %v270 = vand.u32 %v100, 4294901760
    %v271 = vsub.f32 %v100, %v270
    %v272 = vand.u32 %v271, 4294901760
    %273 = vmatpush.msra.mxu0 %v272
    %v274 = vand.u32 %v99, 4294901760
    %v275 = vsub.f32 %v99, %v274
    %v276 = vand.u32 %v275, 4294901760
    %277 = vmatpush.msra.mxu0 %v276
    %v278 = vand.u32 %v98, 4294901760
    %v279 = vsub.f32 %v98, %v278
    %v280 = vand.u32 %v279, 4294901760
    %281 = vmatpush.msra.mxu0 %v280
    %v282 = vand.u32 %v97, 4294901760
    %v283 = vsub.f32 %v97, %v282
    %v284 = vand.u32 %v283, 4294901760
    %285 = vmatpush.msra.mxu0 %v284
    %v286 = vand.u32 %v103, 4294901760
    %287 = vmatmul.f32.gmra.mxu0 %v286
    %v288 = vpop.f32.mrf.mxu0
    %v289 = vadd.f32 %v250, %v288
    %v290 = vand.u32 %v106, 4294901760
    %291 = vmatmul.f32.gmra.mxu0 %v290
    %v292 = vpop.f32.mrf.mxu0
    %v293 = vadd.f32 %v256, %v292
    %294 = vdwg.mxu0
    %295 = vmatpush.msra.mxu0 0.0
    %296 = vmatpush.msra.mxu0 0.0
    %297 = vmatpush.msra.mxu0 0.0
    %298 = vmatpush.msra.mxu0 0.0
    %299 = vmatpush.msra.mxu0 0.0
    %300 = vmatpush.msra.mxu0 0.0
    %301 = vmatpush.msra.mxu0 0.0
    %302 = vmatpush.msra.mxu0 0.0
    %303 = vmatpush.msra.mxu0 0.0
    %304 = vmatpush.msra.mxu0 0.0
    %305 = vmatpush.msra.mxu0 0.0
    %306 = vmatpush.msra.mxu0 0.0
    %v307 = vand.u32 %v100, 4294901760
    %308 = vmatpush.msra.mxu0 %v307
    %v309 = vand.u32 %v99, 4294901760
    %310 = vmatpush.msra.mxu0 %v309
    %v311 = vand.u32 %v98, 4294901760
    %312 = vmatpush.msra.mxu0 %v311
    %v313 = vand.u32 %v97, 4294901760
    %314 = vmatpush.msra.mxu0 %v313
    %v315 = vand.u32 %v103, 4294901760
    %316 = vmatmul.f32.gmra.mxu0 %v315
    %v317 = vpop.f32.mrf.mxu0
    %v318 = vadd.f32 %v289, %v317
    %v319 = vand.u32 %v106, 4294901760
    %320 = vmatmul.f32.gmra.mxu0 %v319
    %v321 = vpop.f32.mrf.mxu0
    %v322 = vadd.f32 %v293, %v321
    %323 = vdwg.mxu0
    %vm324 = vcmask 1045504
    %v325 = vrot.slane %v91, 2
    %v326 = vrot.slane %v92, 2
    %v327 = vsel %vm324, %v325, %v326
    %v328 = vsel %vm101, %v327, 0
    %v330 = vsel %vm101, %v326, 0
    %332 = vmatpush.msra.mxu0 0.0
    %333 = vmatpush.msra.mxu0 0.0
    %334 = vmatpush.msra.mxu0 0.0
    %335 = vmatpush.msra.mxu0 0.0
    %336 = vmatpush.msra.mxu0 0.0
    %337 = vmatpush.msra.mxu0 0.0
    %338 = vmatpush.msra.mxu0 0.0
    %339 = vmatpush.msra.mxu0 0.0
    %340 = vmatpush.msra.mxu0 0.0
    %341 = vmatpush.msra.mxu0 0.0
    %342 = vmatpush.msra.mxu0 0.0
    %343 = vmatpush.msra.mxu0 0.0
    %v344 = vand.u32 %v96, 4294901760
    %345 = vmatpush.msra.mxu0 %v344
    %v346 = vand.u32 %v95, 4294901760
    %347 = vmatpush.msra.mxu0 %v346
    %v348 = vand.u32 %v94, 4294901760
    %349 = vmatpush.msra.mxu0 %v348
    %v350 = vand.u32 %v93, 4294901760
    %351 = vmatpush.msra.mxu0 %v350
    %v352 = vand.u32 %v328, 4294901760
    %v353 = vsub.f32 %v328, %v352
    %v354 = vand.u32 %v353, 4294901760
    %v355 = vsub.f32 %v353, %v354
    %v356 = vand.u32 %v355, 4294901760
    %357 = vmatmul.f32.gmra.mxu0 %v356
    %v358 = vpop.f32.mrf.mxu0
    %v359 = vadd.f32 %v318, %v358
    %v360 = vand.u32 %v330, 4294901760
    %v361 = vsub.f32 %v330, %v360
    %v362 = vand.u32 %v361, 4294901760
    %v363 = vsub.f32 %v361, %v362
    %v364 = vand.u32 %v363, 4294901760
    %365 = vmatmul.f32.gmra.mxu0 %v364
    %v366 = vpop.f32.mrf.mxu0
    %v367 = vadd.f32 %v322, %v366
    %368 = vdwg.mxu0
    %369 = vmatpush.msra.mxu0 0.0
    %370 = vmatpush.msra.mxu0 0.0
    %371 = vmatpush.msra.mxu0 0.0
    %372 = vmatpush.msra.mxu0 0.0
    %373 = vmatpush.msra.mxu0 0.0
    %374 = vmatpush.msra.mxu0 0.0
    %375 = vmatpush.msra.mxu0 0.0
    %376 = vmatpush.msra.mxu0 0.0
    %377 = vmatpush.msra.mxu0 0.0
    %378 = vmatpush.msra.mxu0 0.0
    %379 = vmatpush.msra.mxu0 0.0
    %380 = vmatpush.msra.mxu0 0.0
    %v381 = vand.u32 %v96, 4294901760
    %v382 = vsub.f32 %v96, %v381
    %v383 = vand.u32 %v382, 4294901760
    %v384 = vsub.f32 %v382, %v383
    %v385 = vand.u32 %v384, 4294901760
    %386 = vmatpush.msra.mxu0 %v385
    %v387 = vand.u32 %v95, 4294901760
    %v388 = vsub.f32 %v95, %v387
    %v389 = vand.u32 %v388, 4294901760
    %v390 = vsub.f32 %v388, %v389
    %v391 = vand.u32 %v390, 4294901760
    %392 = vmatpush.msra.mxu0 %v391
    %v393 = vand.u32 %v94, 4294901760
    %v394 = vsub.f32 %v94, %v393
    %v395 = vand.u32 %v394, 4294901760
    %v396 = vsub.f32 %v394, %v395
    %v397 = vand.u32 %v396, 4294901760
    %398 = vmatpush.msra.mxu0 %v397
    %v399 = vand.u32 %v93, 4294901760
    %v400 = vsub.f32 %v93, %v399
    %v401 = vand.u32 %v400, 4294901760
    %v402 = vsub.f32 %v400, %v401
    %v403 = vand.u32 %v402, 4294901760
    %404 = vmatpush.msra.mxu0 %v403
    %v405 = vand.u32 %v328, 4294901760
    %406 = vmatmul.f32.gmra.mxu0 %v405
    %v407 = vpop.f32.mrf.mxu0
    %v408 = vadd.f32 %v359, %v407
    %v409 = vand.u32 %v330, 4294901760
    %410 = vmatmul.f32.gmra.mxu0 %v409
    %v411 = vpop.f32.mrf.mxu0
    %v412 = vadd.f32 %v367, %v411
    %413 = vdwg.mxu0
    %414 = vmatpush.msra.mxu0 0.0
    %415 = vmatpush.msra.mxu0 0.0
    %416 = vmatpush.msra.mxu0 0.0
    %417 = vmatpush.msra.mxu0 0.0
    %418 = vmatpush.msra.mxu0 0.0
    %419 = vmatpush.msra.mxu0 0.0
    %420 = vmatpush.msra.mxu0 0.0
    %421 = vmatpush.msra.mxu0 0.0
    %422 = vmatpush.msra.mxu0 0.0
    %423 = vmatpush.msra.mxu0 0.0
    %424 = vmatpush.msra.mxu0 0.0
    %425 = vmatpush.msra.mxu0 0.0
    %v426 = vand.u32 %v96, 4294901760
    %v427 = vsub.f32 %v96, %v426
    %428 = vmatpush.msra.mxu0 %v427
    %v429 = vand.u32 %v95, 4294901760
    %v430 = vsub.f32 %v95, %v429
    %431 = vmatpush.msra.mxu0 %v430
    %v432 = vand.u32 %v94, 4294901760
    %v433 = vsub.f32 %v94, %v432
    %434 = vmatpush.msra.mxu0 %v433
    %v435 = vand.u32 %v93, 4294901760
    %v436 = vsub.f32 %v93, %v435
    %437 = vmatpush.msra.mxu0 %v436
    %v438 = vand.u32 %v328, 4294901760
    %v439 = vsub.f32 %v328, %v438
    %440 = vmatmul.f32.gmra.mxu0 %v439
    %v441 = vpop.f32.mrf.mxu0
    %v442 = vadd.f32 %v408, %v441
    %v443 = vand.u32 %v330, 4294901760
    %v444 = vsub.f32 %v330, %v443
    %445 = vmatmul.f32.gmra.mxu0 %v444
    %v446 = vpop.f32.mrf.mxu0
    %v447 = vadd.f32 %v412, %v446
    %448 = vdwg.mxu0
    %449 = vmatpush.msra.mxu0 0.0
    %450 = vmatpush.msra.mxu0 0.0
    %451 = vmatpush.msra.mxu0 0.0
    %452 = vmatpush.msra.mxu0 0.0
    %453 = vmatpush.msra.mxu0 0.0
    %454 = vmatpush.msra.mxu0 0.0
    %455 = vmatpush.msra.mxu0 0.0
    %456 = vmatpush.msra.mxu0 0.0
    %457 = vmatpush.msra.mxu0 0.0
    %458 = vmatpush.msra.mxu0 0.0
    %459 = vmatpush.msra.mxu0 0.0
    %460 = vmatpush.msra.mxu0 0.0
    %v461 = vand.u32 %v96, 4294901760
    %462 = vmatpush.msra.mxu0 %v461
    %v463 = vand.u32 %v95, 4294901760
    %464 = vmatpush.msra.mxu0 %v463
    %v465 = vand.u32 %v94, 4294901760
    %466 = vmatpush.msra.mxu0 %v465
    %v467 = vand.u32 %v93, 4294901760
    %468 = vmatpush.msra.mxu0 %v467
    %v469 = vand.u32 %v328, 4294901760
    %v470 = vsub.f32 %v328, %v469
    %v471 = vand.u32 %v470, 4294901760
    %472 = vmatmul.f32.gmra.mxu0 %v471
    %v473 = vpop.f32.mrf.mxu0
    %v474 = vadd.f32 %v442, %v473
    %v475 = vand.u32 %v330, 4294901760
    %v476 = vsub.f32 %v330, %v475
    %v477 = vand.u32 %v476, 4294901760
    %478 = vmatmul.f32.gmra.mxu0 %v477
    %v479 = vpop.f32.mrf.mxu0
    %v480 = vadd.f32 %v447, %v479
    %481 = vdwg.mxu0
    %482 = vmatpush.msra.mxu0 0.0
    %483 = vmatpush.msra.mxu0 0.0
    %484 = vmatpush.msra.mxu0 0.0
    %485 = vmatpush.msra.mxu0 0.0
    %486 = vmatpush.msra.mxu0 0.0
    %487 = vmatpush.msra.mxu0 0.0
    %488 = vmatpush.msra.mxu0 0.0
    %489 = vmatpush.msra.mxu0 0.0
    %490 = vmatpush.msra.mxu0 0.0
    %491 = vmatpush.msra.mxu0 0.0
    %492 = vmatpush.msra.mxu0 0.0
    %493 = vmatpush.msra.mxu0 0.0
    %v494 = vand.u32 %v96, 4294901760
    %v495 = vsub.f32 %v96, %v494
    %v496 = vand.u32 %v495, 4294901760
    %497 = vmatpush.msra.mxu0 %v496
    %v498 = vand.u32 %v95, 4294901760
    %v499 = vsub.f32 %v95, %v498
    %v500 = vand.u32 %v499, 4294901760
    %501 = vmatpush.msra.mxu0 %v500
    %v502 = vand.u32 %v94, 4294901760
    %v503 = vsub.f32 %v94, %v502
    %v504 = vand.u32 %v503, 4294901760
    %505 = vmatpush.msra.mxu0 %v504
    %v506 = vand.u32 %v93, 4294901760
    %v507 = vsub.f32 %v93, %v506
    %v508 = vand.u32 %v507, 4294901760
    %509 = vmatpush.msra.mxu0 %v508
    %v510 = vand.u32 %v328, 4294901760
    %511 = vmatmul.f32.gmra.mxu0 %v510
    %v512 = vpop.f32.mrf.mxu0
    %v513 = vadd.f32 %v474, %v512
    %v514 = vand.u32 %v330, 4294901760
    %515 = vmatmul.f32.gmra.mxu0 %v514
    %v516 = vpop.f32.mrf.mxu0
    %v517 = vadd.f32 %v480, %v516
    %518 = vdwg.mxu0
    %519 = vmatpush.msra.mxu0 0.0
    %520 = vmatpush.msra.mxu0 0.0
    %521 = vmatpush.msra.mxu0 0.0
    %522 = vmatpush.msra.mxu0 0.0
    %523 = vmatpush.msra.mxu0 0.0
    %524 = vmatpush.msra.mxu0 0.0
    %525 = vmatpush.msra.mxu0 0.0
    %526 = vmatpush.msra.mxu0 0.0
    %527 = vmatpush.msra.mxu0 0.0
    %528 = vmatpush.msra.mxu0 0.0
    %529 = vmatpush.msra.mxu0 0.0
    %530 = vmatpush.msra.mxu0 0.0
    %v531 = vand.u32 %v96, 4294901760
    %532 = vmatpush.msra.mxu0 %v531
    %v533 = vand.u32 %v95, 4294901760
    %534 = vmatpush.msra.mxu0 %v533
    %v535 = vand.u32 %v94, 4294901760
    %536 = vmatpush.msra.mxu0 %v535
    %v537 = vand.u32 %v93, 4294901760
    %538 = vmatpush.msra.mxu0 %v537
    %v539 = vand.u32 %v328, 4294901760
    %540 = vmatmul.f32.gmra.mxu0 %v539
    %v541 = vpop.f32.mrf.mxu0
    %v542 = vadd.f32 %v513, %v541
    %v543 = vand.u32 %v330, 4294901760
    %544 = vmatmul.f32.gmra.mxu0 %v543
    %v545 = vpop.f32.mrf.mxu0
    %v546 = vadd.f32 %v517, %v545
    %547 = vdwg.mxu0
    %v548 = vld [vmem:[%s5] sm:$0x1]
    %v550 = vperm.slane %v548, 0
    %v552 = vadd.f32 %v542, %v550
    %v553 = vadd.f32 %v546, %v550
    %v554 = vmax.f32 %v552, 0.0
    %v555 = vmax.f32 %v553, 0.0
    %v556 = vld [vmem:[%s6] sm:$0xff]
    %v557 = vld [vmem:[%s6 + $0x8] sm:$0xff]
    %v558 = vld [vmem:[%s6 + $0x10] sm:$0xff]
    %v559 = vld [vmem:[%s6 + $0x18] sm:$0xff]
    %v560 = vld [vmem:[%s7] sm:$0x1]
    %v562 = vperm.slane %v560, 0
    %v565 = vsel %vm101, %v554, 0
    %v568 = vsel %vm101, %v555, 0
    %570 = vmatpush.msra.mxu0 0.0
    %571 = vmatpush.msra.mxu0 0.0
    %572 = vmatpush.msra.mxu0 0.0
    %573 = vmatpush.msra.mxu0 0.0
    %574 = vmatpush.msra.mxu0 0.0
    %575 = vmatpush.msra.mxu0 0.0
    %576 = vmatpush.msra.mxu0 0.0
    %577 = vmatpush.msra.mxu0 0.0
    %578 = vmatpush.msra.mxu0 0.0
    %579 = vmatpush.msra.mxu0 0.0
    %580 = vmatpush.msra.mxu0 0.0
    %581 = vmatpush.msra.mxu0 0.0
    %v582 = vand.u32 %v559, 4294901760
    %583 = vmatpush.msra.mxu0 %v582
    %v584 = vand.u32 %v558, 4294901760
    %585 = vmatpush.msra.mxu0 %v584
    %v586 = vand.u32 %v557, 4294901760
    %587 = vmatpush.msra.mxu0 %v586
    %v588 = vand.u32 %v556, 4294901760
    %589 = vmatpush.msra.mxu0 %v588
    %v590 = vand.u32 %v565, 4294901760
    %v591 = vsub.f32 %v565, %v590
    %v592 = vand.u32 %v591, 4294901760
    %v593 = vsub.f32 %v591, %v592
    %v594 = vand.u32 %v593, 4294901760
    %595 = vmatmul.f32.gmra.mxu0 %v594
    %v596 = vpop.f32.mrf.mxu0
    %v597 = vadd.f32 %v562, %v596
    %v598 = vand.u32 %v568, 4294901760
    %v599 = vsub.f32 %v568, %v598
    %v600 = vand.u32 %v599, 4294901760
    %v601 = vsub.f32 %v599, %v600
    %v602 = vand.u32 %v601, 4294901760
    %603 = vmatmul.f32.gmra.mxu0 %v602
    %v604 = vpop.f32.mrf.mxu0
    %v605 = vadd.f32 %v562, %v604
    %606 = vdwg.mxu0
    %607 = vmatpush.msra.mxu0 0.0
    %608 = vmatpush.msra.mxu0 0.0
    %609 = vmatpush.msra.mxu0 0.0
    %610 = vmatpush.msra.mxu0 0.0
    %611 = vmatpush.msra.mxu0 0.0
    %612 = vmatpush.msra.mxu0 0.0
    %613 = vmatpush.msra.mxu0 0.0
    %614 = vmatpush.msra.mxu0 0.0
    %615 = vmatpush.msra.mxu0 0.0
    %616 = vmatpush.msra.mxu0 0.0
    %617 = vmatpush.msra.mxu0 0.0
    %618 = vmatpush.msra.mxu0 0.0
    %v619 = vand.u32 %v559, 4294901760
    %v620 = vsub.f32 %v559, %v619
    %v621 = vand.u32 %v620, 4294901760
    %v622 = vsub.f32 %v620, %v621
    %v623 = vand.u32 %v622, 4294901760
    %624 = vmatpush.msra.mxu0 %v623
    %v625 = vand.u32 %v558, 4294901760
    %v626 = vsub.f32 %v558, %v625
    %v627 = vand.u32 %v626, 4294901760
    %v628 = vsub.f32 %v626, %v627
    %v629 = vand.u32 %v628, 4294901760
    %630 = vmatpush.msra.mxu0 %v629
    %v631 = vand.u32 %v557, 4294901760
    %v632 = vsub.f32 %v557, %v631
    %v633 = vand.u32 %v632, 4294901760
    %v634 = vsub.f32 %v632, %v633
    %v635 = vand.u32 %v634, 4294901760
    %636 = vmatpush.msra.mxu0 %v635
    %v637 = vand.u32 %v556, 4294901760
    %v638 = vsub.f32 %v556, %v637
    %v639 = vand.u32 %v638, 4294901760
    %v640 = vsub.f32 %v638, %v639
    %v641 = vand.u32 %v640, 4294901760
    %642 = vmatpush.msra.mxu0 %v641
    %v643 = vand.u32 %v565, 4294901760
    %644 = vmatmul.f32.gmra.mxu0 %v643
    %v645 = vpop.f32.mrf.mxu0
    %v646 = vadd.f32 %v597, %v645
    %v647 = vand.u32 %v568, 4294901760
    %648 = vmatmul.f32.gmra.mxu0 %v647
    %v649 = vpop.f32.mrf.mxu0
    %v650 = vadd.f32 %v605, %v649
    %651 = vdwg.mxu0
    %652 = vmatpush.msra.mxu0 0.0
    %653 = vmatpush.msra.mxu0 0.0
    %654 = vmatpush.msra.mxu0 0.0
    %655 = vmatpush.msra.mxu0 0.0
    %656 = vmatpush.msra.mxu0 0.0
    %657 = vmatpush.msra.mxu0 0.0
    %658 = vmatpush.msra.mxu0 0.0
    %659 = vmatpush.msra.mxu0 0.0
    %660 = vmatpush.msra.mxu0 0.0
    %661 = vmatpush.msra.mxu0 0.0
    %662 = vmatpush.msra.mxu0 0.0
    %663 = vmatpush.msra.mxu0 0.0
    %v664 = vand.u32 %v559, 4294901760
    %v665 = vsub.f32 %v559, %v664
    %666 = vmatpush.msra.mxu0 %v665
    %v667 = vand.u32 %v558, 4294901760
    %v668 = vsub.f32 %v558, %v667
    %669 = vmatpush.msra.mxu0 %v668
    %v670 = vand.u32 %v557, 4294901760
    %v671 = vsub.f32 %v557, %v670
    %672 = vmatpush.msra.mxu0 %v671
    %v673 = vand.u32 %v556, 4294901760
    %v674 = vsub.f32 %v556, %v673
    %675 = vmatpush.msra.mxu0 %v674
    %v676 = vand.u32 %v565, 4294901760
    %v677 = vsub.f32 %v565, %v676
    %678 = vmatmul.f32.gmra.mxu0 %v677
    %v679 = vpop.f32.mrf.mxu0
    %v680 = vadd.f32 %v646, %v679
    %v681 = vand.u32 %v568, 4294901760
    %v682 = vsub.f32 %v568, %v681
    %683 = vmatmul.f32.gmra.mxu0 %v682
    %v684 = vpop.f32.mrf.mxu0
    %v685 = vadd.f32 %v650, %v684
    %686 = vdwg.mxu0
    %687 = vmatpush.msra.mxu0 0.0
    %688 = vmatpush.msra.mxu0 0.0
    %689 = vmatpush.msra.mxu0 0.0
    %690 = vmatpush.msra.mxu0 0.0
    %691 = vmatpush.msra.mxu0 0.0
    %692 = vmatpush.msra.mxu0 0.0
    %693 = vmatpush.msra.mxu0 0.0
    %694 = vmatpush.msra.mxu0 0.0
    %695 = vmatpush.msra.mxu0 0.0
    %696 = vmatpush.msra.mxu0 0.0
    %697 = vmatpush.msra.mxu0 0.0
    %698 = vmatpush.msra.mxu0 0.0
    %v699 = vand.u32 %v559, 4294901760
    %700 = vmatpush.msra.mxu0 %v699
    %v701 = vand.u32 %v558, 4294901760
    %702 = vmatpush.msra.mxu0 %v701
    %v703 = vand.u32 %v557, 4294901760
    %704 = vmatpush.msra.mxu0 %v703
    %v705 = vand.u32 %v556, 4294901760
    %706 = vmatpush.msra.mxu0 %v705
    %v707 = vand.u32 %v565, 4294901760
    %v708 = vsub.f32 %v565, %v707
    %v709 = vand.u32 %v708, 4294901760
    %710 = vmatmul.f32.gmra.mxu0 %v709
    %v711 = vpop.f32.mrf.mxu0
    %v712 = vadd.f32 %v680, %v711
    %v713 = vand.u32 %v568, 4294901760
    %v714 = vsub.f32 %v568, %v713
    %v715 = vand.u32 %v714, 4294901760
    %716 = vmatmul.f32.gmra.mxu0 %v715
    %v717 = vpop.f32.mrf.mxu0
    %v718 = vadd.f32 %v685, %v717
    %719 = vdwg.mxu0
    %720 = vmatpush.msra.mxu0 0.0
    %721 = vmatpush.msra.mxu0 0.0
    %722 = vmatpush.msra.mxu0 0.0
    %723 = vmatpush.msra.mxu0 0.0
    %724 = vmatpush.msra.mxu0 0.0
    %725 = vmatpush.msra.mxu0 0.0
    %726 = vmatpush.msra.mxu0 0.0
    %727 = vmatpush.msra.mxu0 0.0
    %728 = vmatpush.msra.mxu0 0.0
    %729 = vmatpush.msra.mxu0 0.0
    %730 = vmatpush.msra.mxu0 0.0
    %731 = vmatpush.msra.mxu0 0.0
    %v732 = vand.u32 %v559, 4294901760
    %v733 = vsub.f32 %v559, %v732
    %v734 = vand.u32 %v733, 4294901760
    %735 = vmatpush.msra.mxu0 %v734
    %v736 = vand.u32 %v558, 4294901760
    %v737 = vsub.f32 %v558, %v736
    %v738 = vand.u32 %v737, 4294901760
    %739 = vmatpush.msra.mxu0 %v738
    %v740 = vand.u32 %v557, 4294901760
    %v741 = vsub.f32 %v557, %v740
    %v742 = vand.u32 %v741, 4294901760
    %743 = vmatpush.msra.mxu0 %v742
    %v744 = vand.u32 %v556, 4294901760
    %v745 = vsub.f32 %v556, %v744
    %v746 = vand.u32 %v745, 4294901760
    %747 = vmatpush.msra.mxu0 %v746
    %v748 = vand.u32 %v565, 4294901760
    %749 = vmatmul.f32.gmra.mxu0 %v748
    %v750 = vpop.f32.mrf.mxu0
    %v751 = vadd.f32 %v712, %v750
    %v752 = vand.u32 %v568, 4294901760
    %753 = vmatmul.f32.gmra.mxu0 %v752
    %v754 = vpop.f32.mrf.mxu0
    %v755 = vadd.f32 %v718, %v754
    %756 = vdwg.mxu0
    %757 = vmatpush.msra.mxu0 0.0
    %758 = vmatpush.msra.mxu0 0.0
    %759 = vmatpush.msra.mxu0 0.0
    %760 = vmatpush.msra.mxu0 0.0
    %761 = vmatpush.msra.mxu0 0.0
    %762 = vmatpush.msra.mxu0 0.0
    %763 = vmatpush.msra.mxu0 0.0
    %764 = vmatpush.msra.mxu0 0.0
    %765 = vmatpush.msra.mxu0 0.0
    %766 = vmatpush.msra.mxu0 0.0
    %767 = vmatpush.msra.mxu0 0.0
    %768 = vmatpush.msra.mxu0 0.0
    %v769 = vand.u32 %v559, 4294901760
    %770 = vmatpush.msra.mxu0 %v769
    %v771 = vand.u32 %v558, 4294901760
    %772 = vmatpush.msra.mxu0 %v771
    %v773 = vand.u32 %v557, 4294901760
    %774 = vmatpush.msra.mxu0 %v773
    %v775 = vand.u32 %v556, 4294901760
    %776 = vmatpush.msra.mxu0 %v775
    %v777 = vand.u32 %v565, 4294901760
    %778 = vmatmul.f32.gmra.mxu0 %v777
    %v779 = vpop.f32.mrf.mxu0
    %v780 = vadd.f32 %v751, %v779
    %v781 = vand.u32 %v568, 4294901760
    %782 = vmatmul.f32.gmra.mxu0 %v781
    %v783 = vpop.f32.mrf.mxu0
    %v784 = vadd.f32 %v755, %v783
    %785 = vdwg.mxu0
    %vm788 = vcmask 1041408
    %v789 = vrot.slane %v780, 6
    %v790 = vrot.slane %v784, 6
    %v791 = vsel %vm788, %v789, %v790
    %v794 = vadd.f32 %v89, %v789
    %v795 = vadd.f32 %v90, %v791
    %v796 = vld [vmem:[%s1] sm:$0x3]
    %v797 = vmul.f32 %v89, %v796
    %vm798 = vcmask 115712
    %v799 = vsel %vm798, %v797, 0.0
    %800 = vadd.xlane.f32.xlu0 %v799
    %v801 = vpop.xlane.xlu0 %800
    %v802 = vlaneseq
    %v803 = vand.u32 %v802, 127
    %vm804 = vcmp.eq.s32.totalorder %v803, 0
    %v805 = vsel %vm804, %v801, 0.0
    %v807 = vrot.slane %v794, 2
    %v809 = vadd.f32 %v805, %v807
    %v810 = vsel %vm798, %v809, -inf
    %811 = vmax.xlane.f32.xlu0 %v810
    %v812 = vpop.xlane.xlu0 %811
    %v813 = vsub.f32 %v809, %v812
    %v814 = vmul.f32 %v813, 1.442695
    %v815 = vpow.pop %v814
    %v816 = vsel %vm798, %v815, 0.0
    %817 = vadd.xlane.f32.xlu0 %v816
    %v818 = vpop.xlane.xlu0 %817
    %v819 = vrcp.pop %v818
    %v820 = vmul.f32 %v818, %v819
    %v821 = vsub.f32 1.0, %v820
    %v822 = vmul.f32 %v819, %v821
    %v823 = vadd.f32 %v819, %v822
    %vm824 = vweird.f32 %v818
    %vm825 = vweird.f32 %v819
    %vm826 = vmor %vm824, %vm825
    %v827 = vsel %vm826, %v819, %v823
    %v828 = vand.u32 2147483647, %v818
    %vm829 = vcmp.eq.f32.partialorder %v828, 8.507059e+37
    %v830 = vand.u32 %v818, 2147483648
    %v831 = vor.u32 1.1754944e-38, %v830
    %v832 = vsel %vm829, %v831, %v827
    %v833 = vmul.f32 %v815, %v832
    %834 = vst.msk [vmem:[#allocation7] sm:$0x3] %vm798, %v833
    %v836 = vrot.slane %v795, 2
    %v837 = vsel %vm324, %v807, %v836
    %v840 = vadd.f32 %v794, %v837
    %v841 = vadd.f32 %v795, %v836
    %vm842 = vcmask 121858
    %v843 = vsel %vm842, %v840, -inf
    %844 = vmax.xlane.f32.xlu0 %v843
    %v845 = vpop.xlane.xlu0 %844
    %vm846 = vcmask 119808
    %v847 = vsel %vm846, %v841, -inf
    %848 = vmax.xlane.f32.xlu0 %v847
    %v849 = vpop.xlane.xlu0 %848
    %v850 = vsub.f32 %v840, %v845
    %v851 = vsub.f32 %v841, %v849
    %v852 = vmul.f32 %v850, 1.442695
    %v853 = vpow.pop %v852
    %v854 = vmul.f32 %v851, 1.442695
    %v855 = vpow.pop %v854
    %v856 = vsel %vm842, %v853, 0.0
    %857 = vadd.xlane.f32.xlu0 %v856
    %v858 = vpop.xlane.xlu0 %857
    %v859 = vsel %vm846, %v855, 0.0
    %860 = vadd.xlane.f32.xlu0 %v859
    %v861 = vpop.xlane.xlu0 %860
    %v862 = vrcp.pop %v858
    %v863 = vmul.f32 %v858, %v862
    %v864 = vsub.f32 1.0, %v863
    %v865 = vmul.f32 %v862, %v864
    %v866 = vadd.f32 %v862, %v865
    %vm867 = vweird.f32 %v858
    %vm868 = vweird.f32 %v862
    %vm869 = vmor %vm867, %vm868
    %v870 = vsel %vm869, %v862, %v866
    %v871 = vand.u32 2147483647, %v858
    %vm872 = vcmp.eq.f32.partialorder %v871, 8.507059e+37
    %v873 = vand.u32 %v858, 2147483648
    %v874 = vor.u32 1.1754944e-38, %v873
    %v875 = vsel %vm872, %v874, %v870
    %v876 = vmul.f32 %v853, %v875
    %v877 = vrcp.pop %v861
    %v878 = vmul.f32 %v861, %v877
    %v879 = vsub.f32 1.0, %v878
    %v880 = vmul.f32 %v877, %v879
    %v881 = vadd.f32 %v877, %v880
    %vm882 = vweird.f32 %v861
    %vm883 = vweird.f32 %v877
    %vm884 = vmor %vm882, %vm883
    %v885 = vsel %vm884, %v877, %v881
    %v886 = vand.u32 2147483647, %v861
    %vm887 = vcmp.eq.f32.partialorder %v886, 8.507059e+37
    %v888 = vand.u32 %v861, 2147483648
    %v889 = vor.u32 1.1754944e-38, %v888
    %v890 = vsel %vm887, %v889, %v885
    %v891 = vmul.f32 %v855, %v890
    %892 = vst.msk [vmem:[#allocation7] sm:$0xfc] %vm842, %v876
    %893 = vst.msk [vmem:[#allocation7 + $0x8] sm:$0x3f] %vm846, %v891
    %vm894 = vcmask 121862
    %v895 = vsel %vm894, %v795, -inf
    %896 = vmax.xlane.f32.xlu0 %v895
    %v897 = vpop.xlane.xlu0 %896
    %v898 = vsub.f32 %v795, %v897
    %v899 = vmul.f32 %v898, 1.442695
    %v900 = vpow.pop %v899
    %v901 = vsel %vm894, %v900, 0.0
    %902 = vadd.xlane.f32.xlu0 %v901
    %v903 = vpop.xlane.xlu0 %902
    %v904 = vrcp.pop %v903
    %v905 = vmul.f32 %v903, %v904
    %v906 = vsub.f32 1.0, %v905
    %v907 = vmul.f32 %v904, %v906
    %v908 = vadd.f32 %v904, %v907
    %vm909 = vweird.f32 %v903
    %vm910 = vweird.f32 %v904
    %vm911 = vmor %vm909, %vm910
    %v912 = vsel %vm911, %v904, %v908
    %v913 = vand.u32 2147483647, %v903
    %vm914 = vcmp.eq.f32.partialorder %v913, 8.507059e+37
    %v915 = vand.u32 %v903, 2147483648
    %v916 = vor.u32 1.1754944e-38, %v915
    %v917 = vsel %vm914, %v916, %v912
    %v918 = vmul.f32 %v900, %v917
    %919 = vst.msk [vmem:[#allocation7 + $0x8] sm:$0xc0] %vm894, %v918
    // Predicated region
    $region42: #{tpu_custom_call.1} parent=1 // pred_check
      _
    $region43: #{tpu_custom_call.1} parent=1 // pred_check_branch
      %921 = sbr.rel (0) target = $region45
    $region44: #{tpu_custom_call.1} parent=1 // pred_region
      %923 = vsyncadd [#allocation4], 0
      %s924 = sshll.u32 [#allocation7], 4
      %s925 = int_to_ptr.vmem [resolvable:$true] %s924
      %s926 = sshll.u32 %s8, 4
      %s927 = int_to_ptr.hbm [resolvable:$true] %s926
      %932 = dma.vmem_to_hbm [thread:$0]  %s925, 256, %s927, [#allocation4], 128, 128, 8
    $region45: #{tpu_custom_call.1} parent=1 // pred_fallthru
      _
    // Predicated region
    $region46: #{tpu_custom_call.1} parent=1 // pred_check
      _
    $region47: #{tpu_custom_call.1} parent=1 // pred_check_branch
      %934 = sbr.rel (0) target = $region49
    $region48: #{tpu_custom_call.1} parent=1 // pred_region
      %936 = dma.done [#allocation4], 256
    $region49: #{tpu_custom_call.1} parent=1 // pred_fallthru
      _
    %937 = vsyncpa [#allocation3], 1
    %938 = vsyncpa [#allocation6], 1
    %939 = vsyncpa [#allocation4], 1

</llo_original>
